<compile_context>
chip_gen: v7x
topology: tpu7x:2x2x1
jax: 0.10.0
libtpu: 0.0.40
codegen_flags: <defaults>
</compile_context>

<pallas_src>
import jax
import jax.numpy as jnp
from jax import lax
from jax.experimental import pallas as pl
from jax.experimental.pallas import tpu as pltpu

EPS = 1e-5


def _critic_kernel(state_ref, action_ref,
                   w1_ref, g1_ref, be1_ref,
                   w2a_ref, w2b_ref, g2_ref, be2_ref,
                   w3_ref, b3_ref,
                   out_ref):
    # ---- fc1 (bias-free: cancelled exactly by BN mean subtraction) ---------
    s = state_ref[...]                                              # (B, S) f32
    h1 = jnp.dot(s.astype(jnp.bfloat16), w1_ref[...],
                 preferred_element_type=jnp.float32)                # (B, F1) f32

    # ---- bn1 (training-mode batch statistics, biased variance) -------------
    mean1 = jnp.mean(h1, axis=0, keepdims=True)
    var1 = jnp.mean((h1 - mean1) ** 2, axis=0, keepdims=True)
    scale1 = g1_ref[...] * lax.rsqrt(var1 + EPS)
    shift1 = be1_ref[...] - mean1 * scale1
    xs = jnp.maximum(h1 * scale1 + shift1, 0.0)                     # relu

    # ---- fc2 on cat([xs, action]) as split matmul ---------------------------
    # xs part: full 128x128 MXU matmul (bf16 operands, f32 accumulation).
    h2 = jnp.dot(xs.astype(jnp.bfloat16), w2a_ref[...],
                 preferred_element_type=jnp.float32)                # (B, F2P)
    # action part: K = action_size (tiny) -> unrolled VPU FMAs, not the MXU.
    a = action_ref[...]                                             # (B, A) f32
    w2b = w2b_ref[...]                                              # (A, F2P) f32
    for i in range(w2b_ref.shape[0]):                               # static unroll
        h2 = h2 + a[:, i:i + 1] * w2b[i:i + 1, :]

    # ---- bn2 + relu (padded lanes stay exactly zero) ------------------------
    mean2 = jnp.mean(h2, axis=0, keepdims=True)
    var2 = jnp.mean((h2 - mean2) ** 2, axis=0, keepdims=True)
    scale2 = g2_ref[...] * lax.rsqrt(var2 + EPS)
    shift2 = be2_ref[...] - mean2 * scale2
    x = jnp.maximum(h2 * scale2 + shift2, 0.0)                      # (B, F2P)

    # ---- fc3: N=1 matmul replaced by VPU multiply + XLU lane reduction ------
    out_ref[...] = (jnp.sum(x * w3_ref[...], axis=-1, keepdims=True)
                    + b3_ref[0, 0])                                 # (B, 1)


def critic_forward(state, action, params):
    """state: (B, state_size), action: (B, action_size) -> Q-values (B, 1)."""
    B = state.shape[0]
    vmem = pl.BlockSpec(memory_space=pltpu.MemorySpace.VMEM)
    smem = pl.BlockSpec(memory_space=pltpu.MemorySpace.SMEM)
    args = (state, action,
            params["w1t"], params["g1"], params["be1"],
            params["w2at"], params["w2b"], params["g2"], params["be2"],
            params["w3row"], params["b3"])
    in_specs = [vmem] * (len(args) - 1) + [smem]   # b3 is a scalar -> SMEM
    return pl.pallas_call(
        _critic_kernel,
        out_shape=jax.ShapeDtypeStruct((B, 1), jnp.float32),
        in_specs=in_specs,
        out_specs=vmem,
    )(*args)


def init_params(key, state_size, action_size, fc1_units=128, fc2_units=64,
                fc2_pad=128):
    """Deterministic init mimicking PyTorch reset_parameters().

    Returns (raw, packed): raw = PyTorch-layout f32 params, packed = kernel
    layout (transposed, fc2 padded to `fc2_pad`, MXU weights in bf16).
    """
    ks = jax.random.split(key, 6)
    # hidden_init uses weight.size()[0] == out_features  ->  lim = 1/sqrt(out)
    lim1 = 1.0 / jnp.sqrt(jnp.float32(fc1_units))
    lim2 = 1.0 / jnp.sqrt(jnp.float32(fc2_units))
    w1 = jax.random.uniform(ks[0], (fc1_units, state_size), jnp.float32, -lim1, lim1)
    w2 = jax.random.uniform(ks[1], (fc2_units, fc1_units + action_size),
                            jnp.float32, -lim2, lim2)
    w3 = jax.random.uniform(ks[2], (1, fc2_units), jnp.float32, -0.003, 0.003)
    # PyTorch Linear default bias init: U(-1/sqrt(fan_in), 1/sqrt(fan_in))
    b1 = jax.random.uniform(ks[3], (fc1_units,), jnp.float32,
                            -1.0 / jnp.sqrt(jnp.float32(state_size)),
                            1.0 / jnp.sqrt(jnp.float32(state_size)))
    b2 = jax.random.uniform(ks[4], (fc2_units,), jnp.float32,
                            -1.0 / jnp.sqrt(jnp.float32(fc1_units + action_size)),
                            1.0 / jnp.sqrt(jnp.float32(fc1_units + action_size)))
    b3 = jax.random.uniform(ks[5], (1,), jnp.float32,
                            -1.0 / jnp.sqrt(jnp.float32(fc2_units)),
                            1.0 / jnp.sqrt(jnp.float32(fc2_units)))
    # BatchNorm1d defaults: weight=1, bias=0
    g1 = jnp.ones((fc1_units,), jnp.float32)
    be1 = jnp.zeros((fc1_units,), jnp.float32)
    g2 = jnp.ones((fc2_units,), jnp.float32)
    be2 = jnp.zeros((fc2_units,), jnp.float32)

    raw = dict(w1=w1, b1=b1, w2=w2, b2=b2, w3=w3, b3=b3,
               g1=g1, be1=be1, g2=g2, be2=be2)

    pad = fc2_pad - fc2_units
    w2a = w2[:, :fc1_units]                     # (fc2, fc1)   xs part
    w2b = w2[:, fc1_units:]                     # (fc2, A)     action part
    packed = {
        "w1t": w1.T.astype(jnp.bfloat16),                                   # (S, F1)
        "g1": g1.reshape(1, fc1_units),
        "be1": be1.reshape(1, fc1_units),
        "w2at": jnp.pad(w2a.T, ((0, 0), (0, pad))).astype(jnp.bfloat16),    # (F1, F2P)
        "w2b": jnp.pad(w2b.T, ((0, 0), (0, pad))),                          # (A, F2P) f32
        "g2": jnp.pad(g2, (0, pad), constant_values=1.0).reshape(1, fc2_pad),
        "be2": jnp.pad(be2, (0, pad)).reshape(1, fc2_pad),
        "w3row": jnp.pad(w3.reshape(-1), (0, pad)).reshape(1, fc2_pad),     # (1, F2P)
        "b3": b3.reshape(1, 1),
    }
    return raw, packed


def critic_reference_torch(state, action, p):
    """f32 pure-JAX reference matching the PyTorch module forward (training BN)."""
    h1 = state @ p["w1"].T + p["b1"]
    m1 = h1.mean(axis=0, keepdims=True)
    v1 = ((h1 - m1) ** 2).mean(axis=0, keepdims=True)
    xs = jnp.maximum((h1 - m1) / jnp.sqrt(v1 + EPS) * p["g1"] + p["be1"], 0.0)
    cat = jnp.concatenate([xs, action], axis=1)
    h2 = cat @ p["w2"].T + p["b2"]
    m2 = h2.mean(axis=0, keepdims=True)
    v2 = ((h2 - m2) ** 2).mean(axis=0, keepdims=True)
    x = jnp.maximum((h2 - m2) / jnp.sqrt(v2 + EPS) * p["g2"] + p["be2"], 0.0)
    return x @ p["w3"].T + p["b3"]


def critic_reference_matched(state, action, p):
    """Pure-JAX reference mirroring the kernel's op choices (bf16 MXU operands)."""
    h1 = jnp.dot(state.astype(jnp.bfloat16), p["w1t"],
                 preferred_element_type=jnp.float32)
    m1 = h1.mean(axis=0, keepdims=True)
    v1 = ((h1 - m1) ** 2).mean(axis=0, keepdims=True)
    s1 = p["g1"] * lax.rsqrt(v1 + EPS)
    xs = jnp.maximum(h1 * s1 + (p["be1"] - m1 * s1), 0.0)
    h2 = (jnp.dot(xs.astype(jnp.bfloat16), p["w2at"],
                  preferred_element_type=jnp.float32)
          + action @ p["w2b"])
    m2 = h2.mean(axis=0, keepdims=True)
    v2 = ((h2 - m2) ** 2).mean(axis=0, keepdims=True)
    s2 = p["g2"] * lax.rsqrt(v2 + EPS)
    x = jnp.maximum(h2 * s2 + (p["be2"] - m2 * s2), 0.0)
    return jnp.sum(x * p["w3row"], axis=-1, keepdims=True) + p["b3"][0, 0]


if __name__ == "__main__":
    # Small shapes, but batch is a sublane multiple so the MXU sees >8 rows.
    B, STATE_SIZE, ACTION_SIZE = 64, 16, 4

    key = jax.random.PRNGKey(0)
    k_params, k_state, k_action = jax.random.split(key, 3)

    raw, packed = init_params(k_params, STATE_SIZE, ACTION_SIZE)
    state = jax.random.normal(k_state, (B, STATE_SIZE), jnp.float32)
    action = jax.random.normal(k_action, (B, ACTION_SIZE), jnp.float32)

    q = jax.block_until_ready(critic_forward(state, action, packed))
    assert q.shape == (B, 1), q.shape

    # Tight check vs. a reference performing the same ops (bf16 MXU operands).
    q_matched = critic_reference_matched(state, action, packed)
    assert jnp.allclose(q, q_matched, atol=1e-3, rtol=1e-3), \
        float(jnp.max(jnp.abs(q - q_matched)))

    # Looser check vs. the full-precision PyTorch-semantics reference
    # (bf16 matmul operands are the only approximation in the kernel).
    q_torch = critic_reference_torch(state, action, raw)
    assert jnp.allclose(q, q_torch, atol=3e-2, rtol=3e-2), \
        float(jnp.max(jnp.abs(q - q_torch)))

    print("KERNEL_OK")
</pallas_src>

<mosaic_0001>
module attributes {stable_mosaic.version = 11 : i64} {
  func.func @_critic_kernel(%arg0: memref<64x16xf32, #tpu.memory_space<vmem>>, %arg1: memref<64x4xf32, #tpu.memory_space<vmem>>, %arg2: memref<16x128xbf16, #tpu.memory_space<vmem>>, %arg3: memref<1x128xf32, #tpu.memory_space<vmem>>, %arg4: memref<1x128xf32, #tpu.memory_space<vmem>>, %arg5: memref<128x128xbf16, #tpu.memory_space<vmem>>, %arg6: memref<4x128xf32, #tpu.memory_space<vmem>>, %arg7: memref<1x128xf32, #tpu.memory_space<vmem>>, %arg8: memref<1x128xf32, #tpu.memory_space<vmem>>, %arg9: memref<1x128xf32, #tpu.memory_space<vmem>>, %arg10: memref<1x1xf32, #tpu.memory_space<smem>>, %arg11: memref<64x1xf32, #tpu.memory_space<vmem>>) attributes {dimension_semantics = [], scalar_prefetch = 0 : i64, scratch_operands = 0 : i64, tpu.core_type = #tpu.core_type<tc>} {
    %c0 = arith.constant 0 : index
    %c0_0 = arith.constant 0 : index
    %0 = vector.load %arg0[%c0, %c0_0] : memref<64x16xf32, #tpu.memory_space<vmem>>, vector<64x16xf32>
    %1 = arith.truncf %0 : vector<64x16xf32> to vector<64x16xbf16>
    %c0_1 = arith.constant 0 : index
    %c0_2 = arith.constant 0 : index
    %2 = vector.load %arg2[%c0_1, %c0_2] : memref<16x128xbf16, #tpu.memory_space<vmem>>, vector<16x128xbf16>
    %cst = arith.constant dense<0.000000e+00> : vector<64x128xf32>
    %3 = tpu.matmul %1, %2, %cst {dimension_numbers = #tpu.dot_dimension_numbers<[1], [0], [0], [1], [0, 0, 1, 1], [], []>} : vector<64x16xbf16>, vector<16x128xbf16>, vector<64x128xf32> -> vector<64x128xf32>
    %cst_3 = arith.constant dense<0.000000e+00> : vector<128xf32>
    %4 = vector.multi_reduction <add>, %3, %cst_3 [0] : vector<64x128xf32> to vector<128xf32>
    %5 = vector.shape_cast %4 : vector<128xf32> to vector<1x128xf32>
    %cst_4 = arith.constant 6.400000e+01 : f32
    %6 = vector.broadcast %cst_4 : f32 to vector<1x128xf32>
    %7 = arith.divf %5, %6 : vector<1x128xf32>
    %8 = vector.broadcast %7 : vector<1x128xf32> to vector<64x128xf32>
    %9 = arith.subf %3, %8 : vector<64x128xf32>
    %10 = arith.mulf %9, %9 : vector<64x128xf32>
    %cst_5 = arith.constant dense<0.000000e+00> : vector<128xf32>
    %11 = vector.multi_reduction <add>, %10, %cst_5 [0] : vector<64x128xf32> to vector<128xf32>
    %12 = vector.shape_cast %11 : vector<128xf32> to vector<1x128xf32>
    %cst_6 = arith.constant 6.400000e+01 : f32
    %13 = vector.broadcast %cst_6 : f32 to vector<1x128xf32>
    %14 = arith.divf %12, %13 : vector<1x128xf32>
    %c0_7 = arith.constant 0 : index
    %c0_8 = arith.constant 0 : index
    %15 = vector.load %arg3[%c0_7, %c0_8] : memref<1x128xf32, #tpu.memory_space<vmem>>, vector<1x128xf32>
    %cst_9 = arith.constant 9.99999974E-6 : f32
    %16 = vector.broadcast %cst_9 : f32 to vector<1x128xf32>
    %17 = arith.addf %14, %16 : vector<1x128xf32>
    %18 = math.rsqrt %17 : vector<1x128xf32>
    %19 = arith.mulf %15, %18 : vector<1x128xf32>
    %c0_10 = arith.constant 0 : index
    %c0_11 = arith.constant 0 : index
    %20 = vector.load %arg4[%c0_10, %c0_11] : memref<1x128xf32, #tpu.memory_space<vmem>>, vector<1x128xf32>
    %21 = arith.mulf %7, %19 : vector<1x128xf32>
    %22 = arith.subf %20, %21 : vector<1x128xf32>
    %23 = vector.broadcast %19 : vector<1x128xf32> to vector<64x128xf32>
    %24 = arith.mulf %3, %23 : vector<64x128xf32>
    %25 = vector.broadcast %22 : vector<1x128xf32> to vector<64x128xf32>
    %26 = arith.addf %24, %25 : vector<64x128xf32>
    %cst_12 = arith.constant 0.000000e+00 : f32
    %27 = vector.broadcast %cst_12 : f32 to vector<64x128xf32>
    %28 = arith.maximumf %26, %27 : vector<64x128xf32>
    %29 = arith.truncf %28 : vector<64x128xf32> to vector<64x128xbf16>
    %c0_13 = arith.constant 0 : index
    %c0_14 = arith.constant 0 : index
    %30 = vector.load %arg5[%c0_13, %c0_14] : memref<128x128xbf16, #tpu.memory_space<vmem>>, vector<128x128xbf16>
    %cst_15 = arith.constant dense<0.000000e+00> : vector<64x128xf32>
    %31 = tpu.matmul %29, %30, %cst_15 {dimension_numbers = #tpu.dot_dimension_numbers<[1], [0], [0], [1], [0, 0, 1, 1], [], []>} : vector<64x128xbf16>, vector<128x128xbf16>, vector<64x128xf32> -> vector<64x128xf32>
    %c0_16 = arith.constant 0 : index
    %c0_17 = arith.constant 0 : index
    %32 = vector.load %arg1[%c0_16, %c0_17] : memref<64x4xf32, #tpu.memory_space<vmem>>, vector<64x4xf32>
    %c0_18 = arith.constant 0 : index
    %c0_19 = arith.constant 0 : index
    %33 = vector.load %arg6[%c0_18, %c0_19] : memref<4x128xf32, #tpu.memory_space<vmem>>, vector<4x128xf32>
    %34 = vector.extract_strided_slice %32 {offsets = [0, 0], sizes = [64, 1], strides = [1, 1]} : vector<64x4xf32> to vector<64x1xf32>
    %35 = vector.extract_strided_slice %33 {offsets = [0, 0], sizes = [1, 128], strides = [1, 1]} : vector<4x128xf32> to vector<1x128xf32>
    %36 = vector.broadcast %34 : vector<64x1xf32> to vector<64x128xf32>
    %37 = vector.broadcast %35 : vector<1x128xf32> to vector<64x128xf32>
    %38 = arith.mulf %36, %37 : vector<64x128xf32>
    %39 = arith.addf %31, %38 : vector<64x128xf32>
    %40 = vector.extract_strided_slice %32 {offsets = [0, 1], sizes = [64, 1], strides = [1, 1]} : vector<64x4xf32> to vector<64x1xf32>
    %41 = vector.extract_strided_slice %33 {offsets = [1, 0], sizes = [1, 128], strides = [1, 1]} : vector<4x128xf32> to vector<1x128xf32>
    %42 = vector.broadcast %40 : vector<64x1xf32> to vector<64x128xf32>
    %43 = vector.broadcast %41 : vector<1x128xf32> to vector<64x128xf32>
    %44 = arith.mulf %42, %43 : vector<64x128xf32>
    %45 = arith.addf %39, %44 : vector<64x128xf32>
    %46 = vector.extract_strided_slice %32 {offsets = [0, 2], sizes = [64, 1], strides = [1, 1]} : vector<64x4xf32> to vector<64x1xf32>
    %47 = vector.extract_strided_slice %33 {offsets = [2, 0], sizes = [1, 128], strides = [1, 1]} : vector<4x128xf32> to vector<1x128xf32>
    %48 = vector.broadcast %46 : vector<64x1xf32> to vector<64x128xf32>
    %49 = vector.broadcast %47 : vector<1x128xf32> to vector<64x128xf32>
    %50 = arith.mulf %48, %49 : vector<64x128xf32>
    %51 = arith.addf %45, %50 : vector<64x128xf32>
    %52 = vector.extract_strided_slice %32 {offsets = [0, 3], sizes = [64, 1], strides = [1, 1]} : vector<64x4xf32> to vector<64x1xf32>
    %53 = vector.extract_strided_slice %33 {offsets = [3, 0], sizes = [1, 128], strides = [1, 1]} : vector<4x128xf32> to vector<1x128xf32>
    %54 = vector.broadcast %52 : vector<64x1xf32> to vector<64x128xf32>
    %55 = vector.broadcast %53 : vector<1x128xf32> to vector<64x128xf32>
    %56 = arith.mulf %54, %55 : vector<64x128xf32>
    %57 = arith.addf %51, %56 : vector<64x128xf32>
    %cst_20 = arith.constant dense<0.000000e+00> : vector<128xf32>
    %58 = vector.multi_reduction <add>, %57, %cst_20 [0] : vector<64x128xf32> to vector<128xf32>
    %59 = vector.shape_cast %58 : vector<128xf32> to vector<1x128xf32>
    %cst_21 = arith.constant 6.400000e+01 : f32
    %60 = vector.broadcast %cst_21 : f32 to vector<1x128xf32>
    %61 = arith.divf %59, %60 : vector<1x128xf32>
    %62 = vector.broadcast %61 : vector<1x128xf32> to vector<64x128xf32>
    %63 = arith.subf %57, %62 : vector<64x128xf32>
    %64 = arith.mulf %63, %63 : vector<64x128xf32>
    %cst_22 = arith.constant dense<0.000000e+00> : vector<128xf32>
    %65 = vector.multi_reduction <add>, %64, %cst_22 [0] : vector<64x128xf32> to vector<128xf32>
    %66 = vector.shape_cast %65 : vector<128xf32> to vector<1x128xf32>
    %cst_23 = arith.constant 6.400000e+01 : f32
    %67 = vector.broadcast %cst_23 : f32 to vector<1x128xf32>
    %68 = arith.divf %66, %67 : vector<1x128xf32>
    %c0_24 = arith.constant 0 : index
    %c0_25 = arith.constant 0 : index
    %69 = vector.load %arg7[%c0_24, %c0_25] : memref<1x128xf32, #tpu.memory_space<vmem>>, vector<1x128xf32>
    %cst_26 = arith.constant 9.99999974E-6 : f32
    %70 = vector.broadcast %cst_26 : f32 to vector<1x128xf32>
    %71 = arith.addf %68, %70 : vector<1x128xf32>
    %72 = math.rsqrt %71 : vector<1x128xf32>
    %73 = arith.mulf %69, %72 : vector<1x128xf32>
    %c0_27 = arith.constant 0 : index
    %c0_28 = arith.constant 0 : index
    %74 = vector.load %arg8[%c0_27, %c0_28] : memref<1x128xf32, #tpu.memory_space<vmem>>, vector<1x128xf32>
    %75 = arith.mulf %61, %73 : vector<1x128xf32>
    %76 = arith.subf %74, %75 : vector<1x128xf32>
    %77 = vector.broadcast %73 : vector<1x128xf32> to vector<64x128xf32>
    %78 = arith.mulf %57, %77 : vector<64x128xf32>
    %79 = vector.broadcast %76 : vector<1x128xf32> to vector<64x128xf32>
    %80 = arith.addf %78, %79 : vector<64x128xf32>
    %cst_29 = arith.constant 0.000000e+00 : f32
    %81 = vector.broadcast %cst_29 : f32 to vector<64x128xf32>
    %82 = arith.maximumf %80, %81 : vector<64x128xf32>
    %c0_30 = arith.constant 0 : index
    %c0_31 = arith.constant 0 : index
    %83 = vector.load %arg9[%c0_30, %c0_31] : memref<1x128xf32, #tpu.memory_space<vmem>>, vector<1x128xf32>
    %84 = vector.broadcast %83 : vector<1x128xf32> to vector<64x128xf32>
    %85 = arith.mulf %82, %84 : vector<64x128xf32>
    %cst_32 = arith.constant dense<0.000000e+00> : vector<64xf32>
    %86 = vector.multi_reduction <add>, %85, %cst_32 [1] : vector<64x128xf32> to vector<64xf32>
    %87 = vector.shape_cast %86 : vector<64xf32> to vector<64x1xf32>
    %c0_33 = arith.constant 0 : index
    %c0_34 = arith.constant 0 : index
    %88 = memref.load %arg10[%c0_33, %c0_34] : memref<1x1xf32, #tpu.memory_space<smem>>
    %89 = vector.broadcast %88 : f32 to vector<64x1xf32>
    %90 = arith.addf %87, %89 : vector<64x1xf32>
    %c0_35 = arith.constant 0 : index
    %c0_36 = arith.constant 0 : index
    %91 = vector.load %arg11[%c0_35, %c0_36] : memref<64x1xf32, #tpu.memory_space<vmem>>, vector<64x1xf32>
    tpu.vector_store %arg11[%c0_35, %c0_36], %90 {strides = array<i32>} : memref<64x1xf32, #tpu.memory_space<vmem>>, vector<64x1xf32>,
    return
  }
}

</mosaic_0001>

<llo_original>
// kernel: tpu_custom_call.1
$region0: #{tpu_custom_call.1}
  #allocation0 [shape = 'u32[]', space=smem, size = 0x4, offset = 0x4, fixed_abs, tag = 'smem constant byte address 0x4 - core index']
  #allocation1 [shape = 'u32[144,128]{1,0:T(1,128)}', space=vmem, size = 0x12000, scoped, tag = 'internal scratch']
  #allocation2 [shape = 'f32[1,1]{1,0:T(1,128)S(6)}', space=smem, size = 0x200, scoped, tag = 'scoped memory for tpu_custom_call.1']
  %s0 = inlined_call_operand.vmem [shape: f32[64,16], index: 0, kind: input, shape index: {}]
  %s1 = inlined_call_operand.vmem [shape: f32[64,4], index: 1, kind: input, shape index: {}]
  %s2 = inlined_call_operand.vmem [shape: bf16[16,128], index: 2, kind: input, shape index: {}]
  %s3 = inlined_call_operand.vmem [shape: f32[1,128], index: 3, kind: input, shape index: {}]
  %s4 = inlined_call_operand.vmem [shape: f32[1,128], index: 4, kind: input, shape index: {}]
  %s5 = inlined_call_operand.vmem [shape: bf16[128,128], index: 5, kind: input, shape index: {}]
  %s6 = inlined_call_operand.vmem [shape: f32[4,128], index: 6, kind: input, shape index: {}]
  %s7 = inlined_call_operand.vmem [shape: f32[1,128], index: 7, kind: input, shape index: {}]
  %s8 = inlined_call_operand.vmem [shape: f32[1,128], index: 8, kind: input, shape index: {}]
  %s9 = inlined_call_operand.vmem [shape: f32[1,128], index: 9, kind: input, shape index: {}]
  %s10 = inlined_call_operand.<no memory space> [shape: f32[1,1], index: 10, kind: input, shape index: {}]
  %s11 = inlined_call_operand.vmem [shape: f32[64,1], index: 11, kind: output, shape index: {}]
  %s12 = sld [smem:[#allocation0]]
  $region54: #{tpu_custom_call.1} parent=0
    _
  %s14 = ssub.s32 1, %s12
  %s15 = scalar_select 0, %s14, %s12
  %16 = sst [smem:[#allocation2]] %s10
  // Predicated region
  $region2: #{tpu_custom_call.1} parent=0 // pred_check
    _
  $region3: #{tpu_custom_call.1} parent=0 // pred_check_branch
    %18 = sbr.rel (0) target = $region5
  $region4: #{tpu_custom_call.1} parent=0 // pred_region
    _
  $region5: #{tpu_custom_call.1} parent=0 // pred_fallthru
    _
  // Predicated region
  $region6: #{tpu_custom_call.1} parent=0 // pred_check
    _
  $region7: #{tpu_custom_call.1} parent=0 // pred_check_branch
    %20 = sbr.rel (0) target = $region9
  $region8: #{tpu_custom_call.1} parent=0 // pred_region
    _
  $region9: #{tpu_custom_call.1} parent=0 // pred_fallthru
    _
  // Predicated region
  $region10: #{tpu_custom_call.1} parent=0 // pred_check
    _
  $region11: #{tpu_custom_call.1} parent=0 // pred_check_branch
    %22 = sbr.rel (0) target = $region13
  $region12: #{tpu_custom_call.1} parent=0 // pred_region
    _
  $region13: #{tpu_custom_call.1} parent=0 // pred_fallthru
    _
  // Predicated region
  $region14: #{tpu_custom_call.1} parent=0 // pred_check
    _
  $region15: #{tpu_custom_call.1} parent=0 // pred_check_branch
    %24 = sbr.rel (0) target = $region17
  $region16: #{tpu_custom_call.1} parent=0 // pred_region
    _
  $region17: #{tpu_custom_call.1} parent=0 // pred_fallthru
    _
  // Predicated region
  $region18: #{tpu_custom_call.1} parent=0 // pred_check
    _
  $region19: #{tpu_custom_call.1} parent=0 // pred_check_branch
    %26 = sbr.rel (0) target = $region21
  $region20: #{tpu_custom_call.1} parent=0 // pred_region
    _
  $region21: #{tpu_custom_call.1} parent=0 // pred_fallthru
    _
  // Predicated region
  $region22: #{tpu_custom_call.1} parent=0 // pred_check
    _
  $region23: #{tpu_custom_call.1} parent=0 // pred_check_branch
    %28 = sbr.rel (0) target = $region25
  $region24: #{tpu_custom_call.1} parent=0 // pred_region
    _
  $region25: #{tpu_custom_call.1} parent=0 // pred_fallthru
    _
  // Predicated region
  $region26: #{tpu_custom_call.1} parent=0 // pred_check
    _
  $region27: #{tpu_custom_call.1} parent=0 // pred_check_branch
    %30 = sbr.rel (0) target = $region29
  $region28: #{tpu_custom_call.1} parent=0 // pred_region
    _
  $region29: #{tpu_custom_call.1} parent=0 // pred_fallthru
    _
  // Predicated region
  $region30: #{tpu_custom_call.1} parent=0 // pred_check
    _
  $region31: #{tpu_custom_call.1} parent=0 // pred_check_branch
    %32 = sbr.rel (0) target = $region33
  $region32: #{tpu_custom_call.1} parent=0 // pred_region
    _
  $region33: #{tpu_custom_call.1} parent=0 // pred_fallthru
    _
  // Predicated region
  $region34: #{tpu_custom_call.1} parent=0 // pred_check
    _
  $region35: #{tpu_custom_call.1} parent=0 // pred_check_branch
    %34 = sbr.rel (0) target = $region37
  $region36: #{tpu_custom_call.1} parent=0 // pred_region
    _
  $region37: #{tpu_custom_call.1} parent=0 // pred_fallthru
    _
  // Predicated region
  $region38: #{tpu_custom_call.1} parent=0 // pred_check
    _
  $region39: #{tpu_custom_call.1} parent=0 // pred_check_branch
    %36 = sbr.rel (0) target = $region41
  $region40: #{tpu_custom_call.1} parent=0 // pred_region
    _
  $region41: #{tpu_custom_call.1} parent=0 // pred_fallthru
    _
  // Predicated region
  $region42: #{tpu_custom_call.1} parent=0 // pred_check
    _
  $region43: #{tpu_custom_call.1} parent=0 // pred_check_branch
    %38 = sbr.rel (0) target = $region45
  $region44: #{tpu_custom_call.1} parent=0 // pred_region
    _
  $region45: #{tpu_custom_call.1} parent=0 // pred_fallthru
    _
  %v40 = vld [vmem:[%s0] sm:$0xff]
  %v41 = vld [vmem:[%s0 + $0x8] sm:$0xff]
  %v42 = vld [vmem:[%s0 + $0x10] sm:$0xff]
  %v43 = vld [vmem:[%s0 + $0x18] sm:$0xff]
  %v44 = vld [vmem:[%s0 + $0x20] sm:$0xff]
  %v45 = vld [vmem:[%s0 + $0x28] sm:$0xff]
  %v46 = vld [vmem:[%s0 + $0x30] sm:$0xff]
  %v47 = vld [vmem:[%s0 + $0x38] sm:$0xff]
  %v48 = vpack.c.bf16 %v41, %v40
  %v49 = vpack.c.bf16 %v43, %v42
  %v50 = vpack.c.bf16 %v45, %v44
  %v51 = vpack.c.bf16 %v47, %v46
  %v52 = vld [vmem:[%s2] sm:$0xf]
  %v53 = vld [vmem:[%s2 + $0x4] sm:$0xf]
  %v56 = vunpack.c.l.b16 %v52
  %v57 = vunpack.c.l.b16 %v53
  %v58 = vpack.c.b16 %v57, %v56
  %vm60 = vcmask 130048
  %v62 = vsel %vm60, %v48, 0
  %v65 = vsel %vm60, %v49, 0
  %v68 = vsel %vm60, %v50, 0
  %v71 = vsel %vm60, %v51, 0
  %73 = vmatprep.subr.bf16.mxu0 0
  %74 = vmatpush1.bf16.msra.mxu0 %v58
  %75 = vmatprep.subr.bf16.mxu0 0
  %76 = vmatpush1.bf16.msra.mxu0 0
  %77 = vmatprep.subr.bf16.mxu0 0
  %78 = vmatpush1.bf16.msra.mxu0 0
  %79 = vmatprep.subr.bf16.mxu0 0
  %80 = vmatpush1.bf16.msra.mxu0 0
  %81 = vmatprep.subr.bf16.mxu0 0
  %82 = vmatpush1.bf16.msra.mxu0 0
  %83 = vmatprep.subr.bf16.mxu0 0
  %84 = vmatpush1.bf16.msra.mxu0 0
  %85 = vmatprep.subr.bf16.mxu0 0
  %86 = vmatpush1.bf16.msra.mxu0 0
  %87 = vmatprep.subr.bf16.mxu0 0
  %88 = vmatpush1.bf16.msra.mxu0 0
  %89 = vmatprep.subr.bf16.mxu0 0
  %90 = vmatpush1.bf16.msra.mxu0 0
  %91 = vmatprep.subr.bf16.mxu0 0
  %92 = vmatpush1.bf16.msra.mxu0 0
  %93 = vmatprep.subr.bf16.mxu0 0
  %94 = vmatpush1.bf16.msra.mxu0 0
  %95 = vmatprep.subr.bf16.mxu0 0
  %96 = vmatpush1.bf16.msra.mxu0 0
  %97 = vmatprep.subr.bf16.mxu0 0
  %98 = vmatpush1.bf16.msra.mxu0 0
  %99 = vmatprep.subr.bf16.mxu0 0
  %100 = vmatpush1.bf16.msra.mxu0 0
  %101 = vmatprep.subr.bf16.mxu0 0
  %102 = vmatpush1.bf16.msra.mxu0 0
  %103 = vmatprep.subr.bf16.mxu0 0
  %104 = vmatpush1.bf16.msra.mxu0 0
  %105 = vmatprep.mubr.bf16.mxu0 0
  %106 = vmatmul.mubr.bf16.gmra.mrb[0].mxu0 %v62
  %v107 = vpop.f32.mrb[0].mxu0
  %v108 = vadd.f32 0.0, %v107
  %v109 = vpop.f32.mrb[0].mxu0
  %v110 = vpop.f32.mrb[0].mxu0
  %v111 = vadd.f32 0.0, %v110
  %v112 = vpop.f32.mrb[0].mxu0
  %113 = vmatprep.mubr.bf16.mxu0 0
  %114 = vmatmul.mubr.bf16.gmra.mrb[0].mxu0 %v65
  %v115 = vpop.f32.mrb[0].mxu0
  %v116 = vadd.f32 0.0, %v115
  %v117 = vpop.f32.mrb[0].mxu0
  %v118 = vpop.f32.mrb[0].mxu0
  %v119 = vadd.f32 0.0, %v118
  %v120 = vpop.f32.mrb[0].mxu0
  %121 = vmatprep.mubr.bf16.mxu0 0
  %122 = vmatmul.mubr.bf16.gmra.mrb[0].mxu0 %v68
  %v123 = vpop.f32.mrb[0].mxu0
  %v124 = vadd.f32 0.0, %v123
  %v125 = vpop.f32.mrb[0].mxu0
  %v126 = vpop.f32.mrb[0].mxu0
  %v127 = vadd.f32 0.0, %v126
  %v128 = vpop.f32.mrb[0].mxu0
  %129 = vmatprep.mubr.bf16.mxu0 0
  %130 = vmatmul.mubr.bf16.gmra.mrb[0].mxu0 %v71
  %v131 = vpop.f32.mrb[0].mxu0
  %v132 = vadd.f32 0.0, %v131
  %v133 = vpop.f32.mrb[0].mxu0
  %v134 = vpop.f32.mrb[0].mxu0
  %v135 = vadd.f32 0.0, %v134
  %v136 = vpop.f32.mrb[0].mxu0
  %137 = vdwg.mxu0
  %v138 = vadd.f32 %v108, %v111
  %v139 = vadd.f32 %v138, %v116
  %v140 = vadd.f32 %v139, %v119
  %v141 = vadd.f32 %v140, %v124
  %v142 = vadd.f32 %v141, %v127
  %v143 = vadd.f32 %v142, %v132
  %v144 = vadd.f32 %v143, %v135
  %v145 = vrot.slane %v144, 4
  %v146 = vadd.f32 %v144, %v145
  %v147 = vrot.slane %v146, 2
  %v148 = vadd.f32 %v146, %v147
  %v149 = vrot.slane %v148, 1
  %v150 = vadd.f32 %v148, %v149
  %v151 = vrcp.pop 64.0
  %v152 = vmul.f32 %v150, %v151
  %v153 = vsub.f32 %v108, %v152
  %v154 = vsub.f32 %v111, %v152
  %v155 = vsub.f32 %v116, %v152
  %v156 = vsub.f32 %v119, %v152
  %v157 = vsub.f32 %v124, %v152
  %v158 = vsub.f32 %v127, %v152
  %v159 = vsub.f32 %v132, %v152
  %v160 = vsub.f32 %v135, %v152
  %v161 = vmul.f32 %v153, %v153
  %v162 = vmul.f32 %v154, %v154
  %v163 = vmul.f32 %v155, %v155
  %v164 = vmul.f32 %v156, %v156
  %v165 = vmul.f32 %v157, %v157
  %v166 = vmul.f32 %v158, %v158
  %v167 = vmul.f32 %v159, %v159
  %v168 = vmul.f32 %v160, %v160
  %v169 = vadd.f32 %v161, %v162
  %v170 = vadd.f32 %v169, %v163
  %v171 = vadd.f32 %v170, %v164
  %v172 = vadd.f32 %v171, %v165
  %v173 = vadd.f32 %v172, %v166
  %v174 = vadd.f32 %v173, %v167
  %v175 = vadd.f32 %v174, %v168
  %v176 = vrot.slane %v175, 4
  %v177 = vadd.f32 %v175, %v176
  %v178 = vrot.slane %v177, 2
  %v179 = vadd.f32 %v177, %v178
  %v180 = vrot.slane %v179, 1
  %v181 = vadd.f32 %v179, %v180
  %v182 = vmul.f32 %v181, %v151
  %v183 = vld [vmem:[%s3] sm:$0x1]
  %v184 = vadd.f32 %v182, 1e-05
  %v185 = vrsqrt.pop %v184
  %v186 = vmul.f32 %v183, %v185
  %v187 = vld [vmem:[%s4] sm:$0x1]
  %v188 = vmul.f32 %v152, %v186
  %v189 = vsub.f32 %v187, %v188
  %v191 = vlaneseq
  %v192 = vshrl.u32 %v191, 7
  %v193 = vsub.s32 0, %v192
  %v194 = vrot.slane %v186, %v193
  %v196 = vmul.f32 %v108, %v194
  %v197 = vmul.f32 %v111, %v194
  %v198 = vmul.f32 %v116, %v194
  %v199 = vmul.f32 %v119, %v194
  %v200 = vmul.f32 %v124, %v194
  %v201 = vmul.f32 %v127, %v194
  %v202 = vmul.f32 %v132, %v194
  %v203 = vmul.f32 %v135, %v194
  %v205 = vlaneseq
  %v206 = vshrl.u32 %v205, 7
  %v207 = vsub.s32 0, %v206
  %v208 = vrot.slane %v189, %v207
  %v210 = vadd.f32 %v196, %v208
  %v211 = vadd.f32 %v197, %v208
  %v212 = vadd.f32 %v198, %v208
  %v213 = vadd.f32 %v199, %v208
  %v214 = vadd.f32 %v200, %v208
  %v215 = vadd.f32 %v201, %v208
  %v216 = vadd.f32 %v202, %v208
  %v217 = vadd.f32 %v203, %v208
  %v218 = vmax.f32 %v210, 0.0
  %v219 = vmax.f32 %v211, 0.0
  %v220 = vmax.f32 %v212, 0.0
  %v221 = vmax.f32 %v213, 0.0
  %v222 = vmax.f32 %v214, 0.0
  %v223 = vmax.f32 %v215, 0.0
  %v224 = vmax.f32 %v216, 0.0
  %v225 = vmax.f32 %v217, 0.0
  %v226 = vpack.c.bf16 %v219, %v218
  %v227 = vpack.c.bf16 %v221, %v220
  %v228 = vpack.c.bf16 %v223, %v222
  %v229 = vpack.c.bf16 %v225, %v224
  %v230 = vld [vmem:[%s5] sm:$0xf]
  %v231 = vld [vmem:[%s5 + $0x4] sm:$0xf]
  %v232 = vld [vmem:[%s5 + $0x8] sm:$0xf]
  %v233 = vld [vmem:[%s5 + $0xc] sm:$0xf]
  %v234 = vld [vmem:[%s5 + $0x10] sm:$0xf]
  %v235 = vld [vmem:[%s5 + $0x14] sm:$0xf]
  %v236 = vld [vmem:[%s5 + $0x18] sm:$0xf]
  %v237 = vld [vmem:[%s5 + $0x1c] sm:$0xf]
  %v238 = vld [vmem:[%s5 + $0x20] sm:$0xf]
  %v239 = vld [vmem:[%s5 + $0x24] sm:$0xf]
  %v240 = vld [vmem:[%s5 + $0x28] sm:$0xf]
  %v241 = vld [vmem:[%s5 + $0x2c] sm:$0xf]
  %v242 = vld [vmem:[%s5 + $0x30] sm:$0xf]
  %v243 = vld [vmem:[%s5 + $0x34] sm:$0xf]
  %v244 = vld [vmem:[%s5 + $0x38] sm:$0xf]
  %v245 = vld [vmem:[%s5 + $0x3c] sm:$0xf]
  %v246 = vld [vmem:[%s1] sm:$0xff]
  %v247 = vld [vmem:[%s1 + $0x8] sm:$0xff]
  %v248 = vld [vmem:[%s1 + $0x10] sm:$0xff]
  %v249 = vld [vmem:[%s1 + $0x18] sm:$0xff]
  %v250 = vld [vmem:[%s1 + $0x20] sm:$0xff]
  %v251 = vld [vmem:[%s1 + $0x28] sm:$0xff]
  %v252 = vld [vmem:[%s1 + $0x30] sm:$0xff]
  %v253 = vld [vmem:[%s1 + $0x38] sm:$0xff]
  %v254 = vld [vmem:[%s6] sm:$0xf]
  %256 = vset.pattern.permute.xlu0 0
  %257 = vperm.xlu0 %256, %v246
  %v258 = vpop.permute.xlu0 %257
  %261 = vset.pattern.permute.xlu0 0
  %262 = vperm.xlu0 %261, %v247
  %v263 = vpop.permute.xlu0 %262
  %266 = vset.pattern.permute.xlu0 0
  %267 = vperm.xlu0 %266, %v248
  %v268 = vpop.permute.xlu0 %267
  %271 = vset.pattern.permute.xlu0 0
  %272 = vperm.xlu0 %271, %v249
  %v273 = vpop.permute.xlu0 %272
  %276 = vset.pattern.permute.xlu0 0
  %277 = vperm.xlu0 %276, %v250
  %v278 = vpop.permute.xlu0 %277
  %281 = vset.pattern.permute.xlu0 0
  %282 = vperm.xlu0 %281, %v251
  %v283 = vpop.permute.xlu0 %282
  %286 = vset.pattern.permute.xlu0 0
  %287 = vperm.xlu0 %286, %v252
  %v288 = vpop.permute.xlu0 %287
  %291 = vset.pattern.permute.xlu0 0
  %292 = vperm.xlu0 %291, %v253
  %v293 = vpop.permute.xlu0 %292
  %v295 = vlaneseq
  %v296 = vshrl.u32 %v295, 7
  %v297 = vsub.s32 0, %v296
  %v298 = vrot.slane %v254, %v297
  %v299 = vmul.f32 %v258, %v298
  %v300 = vmul.f32 %v263, %v298
  %v301 = vmul.f32 %v268, %v298
  %v302 = vmul.f32 %v273, %v298
  %v303 = vmul.f32 %v278, %v298
  %v304 = vmul.f32 %v283, %v298
  %v305 = vmul.f32 %v288, %v298
  %v306 = vmul.f32 %v293, %v298
  %v323 = vunpack.c.l.b16 %v230
  %v324 = vunpack.c.l.b16 %v231
  %v325 = vunpack.c.l.b16 %v232
  %v326 = vunpack.c.l.b16 %v233
  %v327 = vunpack.c.l.b16 %v234
  %v328 = vunpack.c.l.b16 %v235
  %v329 = vunpack.c.l.b16 %v236
  %v330 = vunpack.c.l.b16 %v237
  %v331 = vunpack.c.l.b16 %v238
  %v332 = vunpack.c.l.b16 %v239
  %v333 = vunpack.c.l.b16 %v240
  %v334 = vunpack.c.l.b16 %v241
  %v335 = vunpack.c.l.b16 %v242
  %v336 = vunpack.c.l.b16 %v243
  %v337 = vunpack.c.l.b16 %v244
  %v338 = vunpack.c.l.b16 %v245
  %v339 = vpack.c.b16 %v324, %v323
  %v340 = vpack.c.b16 %v326, %v325
  %v341 = vpack.c.b16 %v328, %v327
  %v342 = vpack.c.b16 %v330, %v329
  %v343 = vpack.c.b16 %v332, %v331
  %v344 = vpack.c.b16 %v334, %v333
  %v345 = vpack.c.b16 %v336, %v335
  %v346 = vpack.c.b16 %v338, %v337
  %355 = vmatprep.subr.bf16.mxu0 0
  %356 = vmatpush1.bf16.msra.mxu0 %v339
  %357 = vmatprep.subr.bf16.mxu0 0
  %358 = vmatpush1.bf16.msra.mxu0 %v340
  %359 = vmatprep.subr.bf16.mxu0 0
  %360 = vmatpush1.bf16.msra.mxu0 %v341
  %361 = vmatprep.subr.bf16.mxu0 0
  %362 = vmatpush1.bf16.msra.mxu0 %v342
  %363 = vmatprep.subr.bf16.mxu0 0
  %364 = vmatpush1.bf16.msra.mxu0 %v343
  %365 = vmatprep.subr.bf16.mxu0 0
  %366 = vmatpush1.bf16.msra.mxu0 %v344
  %367 = vmatprep.subr.bf16.mxu0 0
  %368 = vmatpush1.bf16.msra.mxu0 %v345
  %369 = vmatprep.subr.bf16.mxu0 0
  %370 = vmatpush1.bf16.msra.mxu0 %v346
  %371 = vmatprep.subr.bf16.mxu0 0
  %372 = vmatpush1.bf16.msra.mxu0 0
  %373 = vmatprep.subr.bf16.mxu0 0
  %374 = vmatpush1.bf16.msra.mxu0 0
  %375 = vmatprep.subr.bf16.mxu0 0
  %376 = vmatpush1.bf16.msra.mxu0 0
  %377 = vmatprep.subr.bf16.mxu0 0
  %378 = vmatpush1.bf16.msra.mxu0 0
  %379 = vmatprep.subr.bf16.mxu0 0
  %380 = vmatpush1.bf16.msra.mxu0 0
  %381 = vmatprep.subr.bf16.mxu0 0
  %382 = vmatpush1.bf16.msra.mxu0 0
  %383 = vmatprep.subr.bf16.mxu0 0
  %384 = vmatpush1.bf16.msra.mxu0 0
  %385 = vmatprep.subr.bf16.mxu0 0
  %386 = vmatpush1.bf16.msra.mxu0 0
  %387 = vmatprep.mubr.bf16.mxu0 0
  %388 = vmatmul.mubr.bf16.gmra.mrb[0].mxu0 %v226
  %v389 = vpop.f32.mrb[0].mxu0
  %v390 = vadd.f32 %v299, %v389
  %v391 = vpop.f32.mrb[0].mxu0
  %v392 = vpop.f32.mrb[0].mxu0
  %v393 = vadd.f32 %v300, %v392
  %v394 = vpop.f32.mrb[0].mxu0
  %395 = vmatprep.mubr.bf16.mxu0 0
  %396 = vmatmul.mubr.bf16.gmra.mrb[0].mxu0 %v227
  %v397 = vpop.f32.mrb[0].mxu0
  %v398 = vadd.f32 %v301, %v397
  %v399 = vpop.f32.mrb[0].mxu0
  %v400 = vpop.f32.mrb[0].mxu0
  %v401 = vadd.f32 %v302, %v400
  %v402 = vpop.f32.mrb[0].mxu0
  %403 = vmatprep.mubr.bf16.mxu0 0
  %404 = vmatmul.mubr.bf16.gmra.mrb[0].mxu0 %v228
  %v405 = vpop.f32.mrb[0].mxu0
  %v406 = vadd.f32 %v303, %v405
  %v407 = vpop.f32.mrb[0].mxu0
  %v408 = vpop.f32.mrb[0].mxu0
  %v409 = vadd.f32 %v304, %v408
  %v410 = vpop.f32.mrb[0].mxu0
  %411 = vmatprep.mubr.bf16.mxu0 0
  %412 = vmatmul.mubr.bf16.gmra.mrb[0].mxu0 %v229
  %v413 = vpop.f32.mrb[0].mxu0
  %v414 = vadd.f32 %v305, %v413
  %v415 = vpop.f32.mrb[0].mxu0
  %v416 = vpop.f32.mrb[0].mxu0
  %v417 = vadd.f32 %v306, %v416
  %v418 = vpop.f32.mrb[0].mxu0
  %419 = vdwg.mxu0
  %420 = vset.pattern.permute.xlu0 1
  %421 = vperm.xlu0 %420, %v246
  %v422 = vpop.permute.xlu0 %421
  %424 = vset.pattern.permute.xlu0 1
  %425 = vperm.xlu0 %424, %v247
  %v426 = vpop.permute.xlu0 %425
  %428 = vset.pattern.permute.xlu0 1
  %429 = vperm.xlu0 %428, %v248
  %v430 = vpop.permute.xlu0 %429
  %432 = vset.pattern.permute.xlu0 1
  %433 = vperm.xlu0 %432, %v249
  %v434 = vpop.permute.xlu0 %433
  %436 = vset.pattern.permute.xlu0 1
  %437 = vperm.xlu0 %436, %v250
  %v438 = vpop.permute.xlu0 %437
  %440 = vset.pattern.permute.xlu0 1
  %441 = vperm.xlu0 %440, %v251
  %v442 = vpop.permute.xlu0 %441
  %444 = vset.pattern.permute.xlu0 1
  %445 = vperm.xlu0 %444, %v252
  %v446 = vpop.permute.xlu0 %445
  %448 = vset.pattern.permute.xlu0 1
  %449 = vperm.xlu0 %448, %v253
  %v450 = vpop.permute.xlu0 %449
  %v452 = vlaneseq
  %v453 = vshrl.u32 %v452, 7
  %v454 = vsub.s32 1, %v453
  %v455 = vrot.slane %v254, %v454
  %v456 = vmul.f32 %v422, %v455
  %v457 = vmul.f32 %v426, %v455
  %v458 = vmul.f32 %v430, %v455
  %v459 = vmul.f32 %v434, %v455
  %v460 = vmul.f32 %v438, %v455
  %v461 = vmul.f32 %v442, %v455
  %v462 = vmul.f32 %v446, %v455
  %v463 = vmul.f32 %v450, %v455
  %v464 = vadd.f32 %v390, %v456
  %v465 = vadd.f32 %v393, %v457
  %v466 = vadd.f32 %v398, %v458
  %v467 = vadd.f32 %v401, %v459
  %v468 = vadd.f32 %v406, %v460
  %v469 = vadd.f32 %v409, %v461
  %v470 = vadd.f32 %v414, %v462
  %v471 = vadd.f32 %v417, %v463
  %472 = vset.pattern.permute.xlu0 2
  %473 = vperm.xlu0 %472, %v246
  %v474 = vpop.permute.xlu0 %473
  %476 = vset.pattern.permute.xlu0 2
  %477 = vperm.xlu0 %476, %v247
  %v478 = vpop.permute.xlu0 %477
  %480 = vset.pattern.permute.xlu0 2
  %481 = vperm.xlu0 %480, %v248
  %v482 = vpop.permute.xlu0 %481
  %484 = vset.pattern.permute.xlu0 2
  %485 = vperm.xlu0 %484, %v249
  %v486 = vpop.permute.xlu0 %485
  %488 = vset.pattern.permute.xlu0 2
  %489 = vperm.xlu0 %488, %v250
  %v490 = vpop.permute.xlu0 %489
  %492 = vset.pattern.permute.xlu0 2
  %493 = vperm.xlu0 %492, %v251
  %v494 = vpop.permute.xlu0 %493
  %496 = vset.pattern.permute.xlu0 2
  %497 = vperm.xlu0 %496, %v252
  %v498 = vpop.permute.xlu0 %497
  %500 = vset.pattern.permute.xlu0 2
  %501 = vperm.xlu0 %500, %v253
  %v502 = vpop.permute.xlu0 %501
  %v504 = vlaneseq
  %v505 = vshrl.u32 %v504, 7
  %v506 = vsub.s32 2, %v505
  %v507 = vrot.slane %v254, %v506
  %v508 = vmul.f32 %v474, %v507
  %v509 = vmul.f32 %v478, %v507
  %v510 = vmul.f32 %v482, %v507
  %v511 = vmul.f32 %v486, %v507
  %v512 = vmul.f32 %v490, %v507
  %v513 = vmul.f32 %v494, %v507
  %v514 = vmul.f32 %v498, %v507
  %v515 = vmul.f32 %v502, %v507
  %v516 = vadd.f32 %v464, %v508
  %v517 = vadd.f32 %v465, %v509
  %v518 = vadd.f32 %v466, %v510
  %v519 = vadd.f32 %v467, %v511
  %v520 = vadd.f32 %v468, %v512
  %v521 = vadd.f32 %v469, %v513
  %v522 = vadd.f32 %v470, %v514
  %v523 = vadd.f32 %v471, %v515
  %524 = vset.pattern.permute.xlu0 3
  %525 = vperm.xlu0 %524, %v246
  %v526 = vpop.permute.xlu0 %525
  %528 = vset.pattern.permute.xlu0 3
  %529 = vperm.xlu0 %528, %v247
  %v530 = vpop.permute.xlu0 %529
  %532 = vset.pattern.permute.xlu0 3
  %533 = vperm.xlu0 %532, %v248
  %v534 = vpop.permute.xlu0 %533
  %536 = vset.pattern.permute.xlu0 3
  %537 = vperm.xlu0 %536, %v249
  %v538 = vpop.permute.xlu0 %537
  %540 = vset.pattern.permute.xlu0 3
  %541 = vperm.xlu0 %540, %v250
  %v542 = vpop.permute.xlu0 %541
  %544 = vset.pattern.permute.xlu0 3
  %545 = vperm.xlu0 %544, %v251
  %v546 = vpop.permute.xlu0 %545
  %548 = vset.pattern.permute.xlu0 3
  %549 = vperm.xlu0 %548, %v252
  %v550 = vpop.permute.xlu0 %549
  %552 = vset.pattern.permute.xlu0 3
  %553 = vperm.xlu0 %552, %v253
  %v554 = vpop.permute.xlu0 %553
  %v556 = vlaneseq
  %v557 = vshrl.u32 %v556, 7
  %v558 = vsub.s32 3, %v557
  %v559 = vrot.slane %v254, %v558
  %v560 = vmul.f32 %v526, %v559
  %v561 = vmul.f32 %v530, %v559
  %v562 = vmul.f32 %v534, %v559
  %v563 = vmul.f32 %v538, %v559
  %v564 = vmul.f32 %v542, %v559
  %v565 = vmul.f32 %v546, %v559
  %v566 = vmul.f32 %v550, %v559
  %v567 = vmul.f32 %v554, %v559
  %v568 = vadd.f32 %v516, %v560
  %v569 = vadd.f32 %v517, %v561
  %v570 = vadd.f32 %v518, %v562
  %v571 = vadd.f32 %v519, %v563
  %v572 = vadd.f32 %v520, %v564
  %v573 = vadd.f32 %v521, %v565
  %v574 = vadd.f32 %v522, %v566
  %v575 = vadd.f32 %v523, %v567
  %v576 = vadd.f32 %v568, %v569
  %v577 = vadd.f32 %v576, %v570
  %v578 = vadd.f32 %v577, %v571
  %v579 = vadd.f32 %v578, %v572
  %v580 = vadd.f32 %v579, %v573
  %v581 = vadd.f32 %v580, %v574
  %v582 = vadd.f32 %v581, %v575
  %v583 = vrot.slane %v582, 4
  %v584 = vadd.f32 %v582, %v583
  %v585 = vrot.slane %v584, 2
  %v586 = vadd.f32 %v584, %v585
  %v587 = vrot.slane %v586, 1
  %v588 = vadd.f32 %v586, %v587
  %v589 = vmul.f32 %v588, %v151
  %v590 = vsub.f32 %v568, %v589
  %v591 = vsub.f32 %v569, %v589
  %v592 = vsub.f32 %v570, %v589
  %v593 = vsub.f32 %v571, %v589
  %v594 = vsub.f32 %v572, %v589
  %v595 = vsub.f32 %v573, %v589
  %v596 = vsub.f32 %v574, %v589
  %v597 = vsub.f32 %v575, %v589
  %v598 = vmul.f32 %v590, %v590
  %v599 = vmul.f32 %v591, %v591
  %v600 = vmul.f32 %v592, %v592
  %v601 = vmul.f32 %v593, %v593
  %v602 = vmul.f32 %v594, %v594
  %v603 = vmul.f32 %v595, %v595
  %v604 = vmul.f32 %v596, %v596
  %v605 = vmul.f32 %v597, %v597
  %v606 = vadd.f32 %v598, %v599
  %v607 = vadd.f32 %v606, %v600
  %v608 = vadd.f32 %v607, %v601
  %v609 = vadd.f32 %v608, %v602
  %v610 = vadd.f32 %v609, %v603
  %v611 = vadd.f32 %v610, %v604
  %v612 = vadd.f32 %v611, %v605
  %v613 = vrot.slane %v612, 4
  %v614 = vadd.f32 %v612, %v613
  %v615 = vrot.slane %v614, 2
  %v616 = vadd.f32 %v614, %v615
  %v617 = vrot.slane %v616, 1
  %v618 = vadd.f32 %v616, %v617
  %v619 = vmul.f32 %v618, %v151
  %v620 = vld [vmem:[%s7] sm:$0x1]
  %v621 = vadd.f32 %v619, 1e-05
  %v622 = vrsqrt.pop %v621
  %v623 = vmul.f32 %v620, %v622
  %v624 = vld [vmem:[%s8] sm:$0x1]
  %v625 = vmul.f32 %v589, %v623
  %v626 = vsub.f32 %v624, %v625
  %v628 = vlaneseq
  %v629 = vshrl.u32 %v628, 7
  %v630 = vsub.s32 0, %v629
  %v631 = vrot.slane %v623, %v630
  %v633 = vmul.f32 %v568, %v631
  %v634 = vmul.f32 %v569, %v631
  %v635 = vmul.f32 %v570, %v631
  %v636 = vmul.f32 %v571, %v631
  %v637 = vmul.f32 %v572, %v631
  %v638 = vmul.f32 %v573, %v631
  %v639 = vmul.f32 %v574, %v631
  %v640 = vmul.f32 %v575, %v631
  %v642 = vlaneseq
  %v643 = vshrl.u32 %v642, 7
  %v644 = vsub.s32 0, %v643
  %v645 = vrot.slane %v626, %v644
  %v647 = vadd.f32 %v633, %v645
  %v648 = vadd.f32 %v634, %v645
  %v649 = vadd.f32 %v635, %v645
  %v650 = vadd.f32 %v636, %v645
  %v651 = vadd.f32 %v637, %v645
  %v652 = vadd.f32 %v638, %v645
  %v653 = vadd.f32 %v639, %v645
  %v654 = vadd.f32 %v640, %v645
  %v655 = vmax.f32 %v647, 0.0
  %v656 = vmax.f32 %v648, 0.0
  %v657 = vmax.f32 %v649, 0.0
  %v658 = vmax.f32 %v650, 0.0
  %v659 = vmax.f32 %v651, 0.0
  %v660 = vmax.f32 %v652, 0.0
  %v661 = vmax.f32 %v653, 0.0
  %v662 = vmax.f32 %v654, 0.0
  %v663 = vld [vmem:[%s9] sm:$0x1]
  %v665 = vlaneseq
  %v666 = vshrl.u32 %v665, 7
  %v667 = vsub.s32 0, %v666
  %v668 = vrot.slane %v663, %v667
  %v670 = vmul.f32 %v655, %v668
  %v671 = vmul.f32 %v656, %v668
  %v672 = vmul.f32 %v657, %v668
  %v673 = vmul.f32 %v658, %v668
  %v674 = vmul.f32 %v659, %v668
  %v675 = vmul.f32 %v660, %v668
  %v676 = vmul.f32 %v661, %v668
  %v677 = vmul.f32 %v662, %v668
  %678 = vadd.xlane.f32.xlu0 %v670
  %v679 = vpop.xlane.xlu0 %678
  %680 = vadd.xlane.f32.xlu0 %v671
  %v681 = vpop.xlane.xlu0 %680
  %682 = vadd.xlane.f32.xlu0 %v672
  %v683 = vpop.xlane.xlu0 %682
  %684 = vadd.xlane.f32.xlu0 %v673
  %v685 = vpop.xlane.xlu0 %684
  %686 = vadd.xlane.f32.xlu0 %v674
  %v687 = vpop.xlane.xlu0 %686
  %688 = vadd.xlane.f32.xlu0 %v675
  %v689 = vpop.xlane.xlu0 %688
  %690 = vadd.xlane.f32.xlu0 %v676
  %v691 = vpop.xlane.xlu0 %690
  %692 = vadd.xlane.f32.xlu0 %v677
  %v693 = vpop.xlane.xlu0 %692
  %s694 = sld [smem:[#allocation2]]
  %v695 = vstv %s694
  %v696 = vadd.f32 %v679, %v695
  %v697 = vadd.f32 %v681, %v695
  %v698 = vadd.f32 %v683, %v695
  %v699 = vadd.f32 %v685, %v695
  %v700 = vadd.f32 %v687, %v695
  %v701 = vadd.f32 %v689, %v695
  %v702 = vadd.f32 %v691, %v695
  %v703 = vadd.f32 %v693, %v695
  %vm704 = vcmask 7168
  %705 = vst.msk [vmem:[%s11] sm:$0xff] %vm704, %v696
  %706 = vst.msk [vmem:[%s11 + $0x8] sm:$0xff] %vm704, %v697
  %707 = vst.msk [vmem:[%s11 + $0x10] sm:$0xff] %vm704, %v698
  %708 = vst.msk [vmem:[%s11 + $0x18] sm:$0xff] %vm704, %v699
  %709 = vst.msk [vmem:[%s11 + $0x20] sm:$0xff] %vm704, %v700
  %710 = vst.msk [vmem:[%s11 + $0x28] sm:$0xff] %vm704, %v701
  %711 = vst.msk [vmem:[%s11 + $0x30] sm:$0xff] %vm704, %v702
  %712 = vst.msk [vmem:[%s11 + $0x38] sm:$0xff] %vm704, %v703
  // Predicated region
  $region46: #{tpu_custom_call.1} parent=0 // pred_check
    _
  $region47: #{tpu_custom_call.1} parent=0 // pred_check_branch
    %714 = sbr.rel (0) target = $region49
  $region48: #{tpu_custom_call.1} parent=0 // pred_region
    _
  $region49: #{tpu_custom_call.1} parent=0 // pred_fallthru
    _
  // Predicated region
  $region50: #{tpu_custom_call.1} parent=0 // pred_check
    _
  $region51: #{tpu_custom_call.1} parent=0 // pred_check_branch
    %716 = sbr.rel (0) target = $region53
  $region52: #{tpu_custom_call.1} parent=0 // pred_region
    _
  $region53: #{tpu_custom_call.1} parent=0 // pred_fallthru
    _

</llo_original>
